<compile_context>
chip_gen: v7x
topology: tpu7x:2x2x1
jax: 0.10.0
libtpu: 0.0.40
codegen_flags: <defaults>
</compile_context>

<pallas_src>
import jax
import jax.numpy as jnp
from jax.experimental import pallas as pl
from jax.experimental.pallas import tpu as pltpu


# ----------------------------- Pallas kernel ------------------------------
def _bidaf_pointer_kernel(lens_ref, att_ref, mod_ref, mod2_ref, w_ref, bias_ref,
                          out_ref):
    """Fused pointer projections + masked log-softmax for one batch block.

    lens_ref: (B,)           int32 SMEM (scalar prefetch) valid length per row
    att_ref:  (Bblk, L, 8H)  f32   attention output (original layout)
    mod_ref:  (Bblk, L, 2H)  f32   modeling output
    mod2_ref: (Bblk, L, 2H)  f32   second modeling output (LSTM)
    w_ref:    (12H, 2)       bf16  packed weights [w_att | w_mod1,0 | 0,w_mod2]
    bias_ref: (2,)           f32   SMEM [b_att1+b_mod1, b_att2+b_mod2]
    out_ref:  (Bblk, L, 2)   f32   packed [log_p1, log_p2]
    """
    bblk, seq, d8 = att_ref.shape
    d2 = mod_ref.shape[-1]
    m = bblk * seq
    cdt = jnp.bfloat16

    # Activations read straight from HBM in their original (B, L, D) layout;
    # cast to bf16 in-register for the MXU, accumulate in f32.
    att = att_ref[...].reshape(m, d8).astype(cdt)
    mod = mod_ref[...].reshape(m, d2).astype(cdt)
    mod2 = mod2_ref[...].reshape(m, d2).astype(cdt)
    w = w_ref[...]

    # Single packed weight (one DMA); zero cross terms mean the summed partial
    # products directly give both logit columns: col 0 = start, col 1 = end.
    p = jnp.dot(att, w[0:d8, :], preferred_element_type=jnp.float32)
    p = p + jnp.dot(mod, w[d8:d8 + d2, :], preferred_element_type=jnp.float32)
    p = p + jnp.dot(mod2, w[d8 + d2:d8 + 2 * d2, :],
                    preferred_element_type=jnp.float32)          # (Bblk*L, 2)

    # Per-column bias vector built from the two SMEM scalars.
    col = jax.lax.broadcasted_iota(jnp.int32, (1, 2), 1)
    bias_vec = jnp.where(col == 0, bias_ref[0], bias_ref[1])     # (1, 2) f32

    pos = jax.lax.broadcasted_iota(jnp.int32, (seq, 2), 0)       # (L, 2)
    neg_inf = jnp.float32(-1e30)
    g0 = pl.program_id(0) * bblk

    for b in range(bblk):            # static, unrolled over the batch block
        length = lens_ref[g0 + b]
        valid = pos < length                                     # (L, 2) bool
        logits = p[b * seq:(b + 1) * seq, :] + bias_vec          # (L, 2)
        x = jnp.where(valid, logits, neg_inf)
        mx = jnp.max(x, axis=0, keepdims=True)                   # (1, 2)
        sh = x - mx
        lse = jnp.log(jnp.sum(jnp.exp(sh), axis=0, keepdims=True))
        out_ref[b] = sh - lse                                    # (L, 2)


def _pick_bblk(batch):
    """Largest batch block that divides the batch and keeps >= 2 grid steps
    (so both v7x TensorCores get work)."""
    for cand in (8, 4, 2):
        if batch % cand == 0 and batch // cand >= 2:
            return cand
    return 1


def bidaf_pointers(params, att, mod, mod_2, mask):
    """Fused pointer projections + masked log-softmax via Pallas.

    att: (B, L, 8H), mod/mod_2: (B, L, 2H), mask: (B, L) bool (prefix mask).
    Returns (log_p1, log_p2), each (B, L) float32.
    """
    B, L, D8 = att.shape
    D2 = mod.shape[-1]
    bblk = _pick_bblk(B)
    grid = B // bblk

    # Prefix-mask lengths ride in via scalar prefetch; the mask itself is
    # rebuilt in-kernel (drops the (B, L) f32 mask array + one DMA per step).
    lengths = jnp.sum(mask.astype(jnp.int32), axis=-1)           # (B,) int32

    # Packed (12H, 2) weight with zero cross terms + 2-scalar SMEM bias.
    z2 = jnp.zeros((D2,), jnp.float32)
    w_all = jnp.concatenate([
        jnp.stack([params["w_att1"], params["w_att2"]], axis=1),   # (8H, 2)
        jnp.stack([params["w_mod1"], z2], axis=1),                 # (2H, 2)
        jnp.stack([z2, params["w_mod2"]], axis=1),                 # (2H, 2)
    ], axis=0).astype(jnp.bfloat16)                                # (12H, 2)
    bias = jnp.stack([params["b_att1"] + params["b_mod1"],
                      params["b_att2"] + params["b_mod2"]]).astype(jnp.float32)

    packed = pl.pallas_call(
        _bidaf_pointer_kernel,
        out_shape=jax.ShapeDtypeStruct((B, L, 2), jnp.float32),
        grid_spec=pltpu.PrefetchScalarGridSpec(
            num_scalar_prefetch=1,
            grid=(grid,),
            in_specs=[
                pl.BlockSpec((bblk, L, D8), lambda g, lens: (g, 0, 0)),
                pl.BlockSpec((bblk, L, D2), lambda g, lens: (g, 0, 0)),
                pl.BlockSpec((bblk, L, D2), lambda g, lens: (g, 0, 0)),
                pl.BlockSpec((D8 + 2 * D2, 2), lambda g, lens: (0, 0)),
                pl.BlockSpec(memory_space=pltpu.MemorySpace.SMEM),   # bias
            ],
            out_specs=pl.BlockSpec((bblk, L, 2), lambda g, lens: (g, 0, 0)),
        ),
        compiler_params=pltpu.CompilerParams(
            dimension_semantics=("parallel",),
            # Default scoped VMEM is only 16 MiB on v5e / 32 MiB on v6e+;
            # 32 MiB leaves headroom even on v7x's 64 MiB physical VMEM.
            vmem_limit_bytes=32 * 1024 * 1024),
    )(lengths, att, mod, mod_2, w_all, bias)

    # Splitting the tiny packed (B, L, 2) result in the wrapper is ~2 KiB of
    # HBM traffic -- vastly cheaper than transposing the (B, L, 12H) inputs.
    return packed[..., 0], packed[..., 1]


# --------------------- RNNEncoder (bi-LSTM, length-aware) ------------------
def _lstm_direction(x_tm, lengths, w_ih, w_hh, b_ih, b_hh, reverse):
    """One LSTM direction over time-major x_tm (L, B, D), PyTorch gate order
    (i, f, g, o).  Padded timesteps (t >= length) neither update the state nor
    emit output (pack_padded_sequence semantics).  The input projection is
    hoisted out of the sequential scan (one big matmul over all timesteps)."""
    L, B, _ = x_tm.shape
    H = w_hh.shape[1]
    gates_x = jnp.einsum("lbd,gd->lbg", x_tm, w_ih) + (b_ih + b_hh)  # (L, B, 4H)
    ts = jnp.arange(L)

    def step(carry, inp):
        h, c = carry
        gx, t = inp
        gates = gx + h @ w_hh.T                                      # (B, 4H)
        i, f, g, o = jnp.split(gates, 4, axis=-1)
        i = jax.nn.sigmoid(i)
        f = jax.nn.sigmoid(f)
        g = jnp.tanh(g)
        o = jax.nn.sigmoid(o)
        c_new = f * c + i * g
        h_new = o * jnp.tanh(c_new)
        valid = (t < lengths)[:, None]
        h2 = jnp.where(valid, h_new, h)
        c2 = jnp.where(valid, c_new, c)
        out = jnp.where(valid, h_new, 0.0)
        return (h2, c2), out

    init = (jnp.zeros((B, H), jnp.float32), jnp.zeros((B, H), jnp.float32))
    _, outs = jax.lax.scan(step, init, (gates_x, ts), reverse=reverse)
    return outs                                                      # (L, B, H)


def bilstm_encoder(rnn, x, lengths):
    """RNNEncoder.forward equivalent (eval mode): bidirectional 1-layer LSTM."""
    x_tm = jnp.swapaxes(x, 0, 1).astype(jnp.float32)                 # (L, B, D)
    out_f = _lstm_direction(x_tm, lengths, rnn["w_ih_f"], rnn["w_hh_f"],
                            rnn["b_ih_f"], rnn["b_hh_f"], reverse=False)
    out_b = _lstm_direction(x_tm, lengths, rnn["w_ih_b"], rnn["w_hh_b"],
                            rnn["b_ih_b"], rnn["b_hh_b"], reverse=True)
    out = jnp.concatenate([out_f, out_b], axis=-1)                   # (L, B, 2H)
    return jnp.swapaxes(out, 0, 1)                                   # (B, L, 2H)


# ------------------------------ full forward ------------------------------
def bidaf_output_forward(params, att, mod, mask):
    lengths = jnp.sum(mask.astype(jnp.int32), axis=-1)               # mask.sum(-1)
    mod_2 = bilstm_encoder(params["rnn"], mod, lengths)              # (B, L, 2H)
    return bidaf_pointers(params, att, mod, mod_2, mask)


def bidaf_output_reference(params, att, mod, mask):
    """Pure-JAX reference (same bf16 operand rounding as the kernel)."""
    lengths = jnp.sum(mask.astype(jnp.int32), axis=-1)
    mod_2 = bilstm_encoder(params["rnn"], mod, lengths)

    def bf(x):
        return x.astype(jnp.bfloat16).astype(jnp.float32)

    logits1 = (jnp.einsum("bld,d->bl", bf(att), bf(params["w_att1"]))
               + jnp.einsum("bld,d->bl", bf(mod), bf(params["w_mod1"]))
               + params["b_att1"] + params["b_mod1"])
    logits2 = (jnp.einsum("bld,d->bl", bf(att), bf(params["w_att2"]))
               + jnp.einsum("bld,d->bl", bf(mod_2), bf(params["w_mod2"]))
               + params["b_att2"] + params["b_mod2"])

    def masked_log_softmax(logits, m):
        masked = jnp.where(m, logits, jnp.float32(-1e30))
        return jax.nn.log_softmax(masked, axis=-1)

    return masked_log_softmax(logits1, mask), masked_log_softmax(logits2, mask)


# --------------------------------- main -----------------------------------
if __name__ == "__main__":
    key = jax.random.PRNGKey(0)
    ks = jax.random.split(key, 20)

    H = 16                      # hidden_size
    B, L = 2, 128               # batch, seq length (L multiple of 128: lane-dense)
    D_att, D_mod = 8 * H, 2 * H

    sc_att = 1.0 / (8.0 * H) ** 0.5
    sc_mod = 1.0 / (2.0 * H) ** 0.5
    sc_h = 1.0 / float(H) ** 0.5

    params = {
        "w_att1": jax.random.normal(ks[0], (D_att,), jnp.float32) * sc_att,
        "b_att1": jax.random.normal(ks[1], (), jnp.float32) * 0.1,
        "w_mod1": jax.random.normal(ks[2], (D_mod,), jnp.float32) * sc_mod,
        "b_mod1": jax.random.normal(ks[3], (), jnp.float32) * 0.1,
        "w_att2": jax.random.normal(ks[4], (D_att,), jnp.float32) * sc_att,
        "b_att2": jax.random.normal(ks[5], (), jnp.float32) * 0.1,
        "w_mod2": jax.random.normal(ks[6], (D_mod,), jnp.float32) * sc_mod,
        "b_mod2": jax.random.normal(ks[7], (), jnp.float32) * 0.1,
        "rnn": {
            "w_ih_f": jax.random.normal(ks[8], (4 * H, D_mod), jnp.float32) * sc_mod,
            "w_hh_f": jax.random.normal(ks[9], (4 * H, H), jnp.float32) * sc_h,
            "b_ih_f": jax.random.normal(ks[10], (4 * H,), jnp.float32) * 0.05,
            "b_hh_f": jax.random.normal(ks[11], (4 * H,), jnp.float32) * 0.05,
            "w_ih_b": jax.random.normal(ks[12], (4 * H, D_mod), jnp.float32) * sc_mod,
            "w_hh_b": jax.random.normal(ks[13], (4 * H, H), jnp.float32) * sc_h,
            "b_ih_b": jax.random.normal(ks[14], (4 * H,), jnp.float32) * 0.05,
            "b_hh_b": jax.random.normal(ks[15], (4 * H,), jnp.float32) * 0.05,
        },
    }

    att = jax.random.normal(ks[16], (B, L, D_att), jnp.float32)
    mod = jax.random.normal(ks[17], (B, L, D_mod), jnp.float32)
    lengths = jnp.array([L, L - 32], jnp.int32)               # ragged batch
    mask = jnp.arange(L)[None, :] < lengths[:, None]          # (B, L) bool

    fwd = jax.jit(bidaf_output_forward)
    log_p1, log_p2 = fwd(params, att, mod, mask)
    log_p1 = jax.block_until_ready(log_p1)
    log_p2 = jax.block_until_ready(log_p2)

    assert log_p1.shape == (B, L) and log_p2.shape == (B, L)

    ref_p1, ref_p2 = bidaf_output_reference(params, att, mod, mask)
    assert jnp.allclose(log_p1, ref_p1, atol=1e-2, rtol=1e-2)
    assert jnp.allclose(log_p2, ref_p2, atol=1e-2, rtol=1e-2)
    # valid positions should be proper log-probabilities (sum of exp == 1)
    assert jnp.allclose(jnp.sum(jnp.exp(log_p1), axis=-1), 1.0, atol=1e-3)
    assert jnp.allclose(jnp.sum(jnp.exp(log_p2), axis=-1), 1.0, atol=1e-3)

    print("KERNEL_OK")
</pallas_src>

<mosaic_0001>
module attributes {stable_mosaic.version = 11 : i64} {
  func.func @_bidaf_pointer_kernel(%arg0: i32, %arg1: memref<2xi32, #tpu.memory_space<smem>>, %arg2: memref<1x128x128xf32, #tpu.memory_space<vmem>>, %arg3: memref<1x128x32xf32, #tpu.memory_space<vmem>>, %arg4: memref<1x128x32xf32, #tpu.memory_space<vmem>>, %arg5: memref<192x2xbf16, #tpu.memory_space<vmem>>, %arg6: memref<2xf32, #tpu.memory_space<smem>>, %arg7: memref<1x128x2xf32, #tpu.memory_space<vmem>>) attributes {dimension_semantics = [#tpu.dimension_semantics<parallel>], iteration_bounds = array<i64: 2>, scalar_prefetch = 1 : i64, scratch_operands = 0 : i64, tpu.core_type = #tpu.core_type<tc>, window_params = [{transform_indices = @transform_0, window_bounds = array<i64: 1, 128, 128>}, {transform_indices = @transform_1, window_bounds = array<i64: 1, 128, 32>}, {transform_indices = @transform_2, window_bounds = array<i64: 1, 128, 32>}, {pipeline_mode = #tpu.pipeline_mode<synchronous>, transform_indices = @transform_3, window_bounds = array<i64: 192, 2>}, {transform_indices = @transform_4, window_bounds = array<i64: 2>}, {transform_indices = @transform_5, window_bounds = array<i64: 1, 128, 2>}]} {
    %c0 = arith.constant 0 : index
    %c0_0 = arith.constant 0 : index
    %c0_1 = arith.constant 0 : index
    %0 = vector.load %arg2[%c0, %c0_0, %c0_1] : memref<1x128x128xf32, #tpu.memory_space<vmem>>, vector<1x128x128xf32>
    %1 = vector.shape_cast %0 : vector<1x128x128xf32> to vector<128x128xf32>
    %2 = arith.truncf %1 : vector<128x128xf32> to vector<128x128xbf16>
    %c0_2 = arith.constant 0 : index
    %c0_3 = arith.constant 0 : index
    %c0_4 = arith.constant 0 : index
    %3 = vector.load %arg3[%c0_2, %c0_3, %c0_4] : memref<1x128x32xf32, #tpu.memory_space<vmem>>, vector<1x128x32xf32>
    %4 = vector.shape_cast %3 : vector<1x128x32xf32> to vector<128x32xf32>
    %5 = arith.truncf %4 : vector<128x32xf32> to vector<128x32xbf16>
    %c0_5 = arith.constant 0 : index
    %c0_6 = arith.constant 0 : index
    %c0_7 = arith.constant 0 : index
    %6 = vector.load %arg4[%c0_5, %c0_6, %c0_7] : memref<1x128x32xf32, #tpu.memory_space<vmem>>, vector<1x128x32xf32>
    %7 = vector.shape_cast %6 : vector<1x128x32xf32> to vector<128x32xf32>
    %8 = arith.truncf %7 : vector<128x32xf32> to vector<128x32xbf16>
    %c0_8 = arith.constant 0 : index
    %c0_9 = arith.constant 0 : index
    %9 = vector.load %arg5[%c0_8, %c0_9] : memref<192x2xbf16, #tpu.memory_space<vmem>>, vector<192x2xbf16>
    %10 = vector.extract_strided_slice %9 {offsets = [0, 0], sizes = [128, 2], strides = [1, 1]} : vector<192x2xbf16> to vector<128x2xbf16>
    %cst = arith.constant dense<0.000000e+00> : vector<128x2xf32>
    %11 = tpu.matmul %2, %10, %cst {dimension_numbers = #tpu.dot_dimension_numbers<[1], [0], [0], [1], [0, 0, 1, 1], [], []>} : vector<128x128xbf16>, vector<128x2xbf16>, vector<128x2xf32> -> vector<128x2xf32>
    %12 = vector.extract_strided_slice %9 {offsets = [128, 0], sizes = [32, 2], strides = [1, 1]} : vector<192x2xbf16> to vector<32x2xbf16>
    %cst_10 = arith.constant dense<0.000000e+00> : vector<128x2xf32>
    %13 = tpu.matmul %5, %12, %cst_10 {dimension_numbers = #tpu.dot_dimension_numbers<[1], [0], [0], [1], [0, 0, 1, 1], [], []>} : vector<128x32xbf16>, vector<32x2xbf16>, vector<128x2xf32> -> vector<128x2xf32>
    %14 = arith.addf %11, %13 : vector<128x2xf32>
    %15 = vector.extract_strided_slice %9 {offsets = [160, 0], sizes = [32, 2], strides = [1, 1]} : vector<192x2xbf16> to vector<32x2xbf16>
    %cst_11 = arith.constant dense<0.000000e+00> : vector<128x2xf32>
    %16 = tpu.matmul %8, %15, %cst_11 {dimension_numbers = #tpu.dot_dimension_numbers<[1], [0], [0], [1], [0, 0, 1, 1], [], []>} : vector<128x32xbf16>, vector<32x2xbf16>, vector<128x2xf32> -> vector<128x2xf32>
    %17 = arith.addf %14, %16 : vector<128x2xf32>
    %18 = tpu.iota {dimensions = array<i32: 1>} : vector<1x2xi32>
    %c0_i32 = arith.constant 0 : i32
    %19 = vector.broadcast %c0_i32 : i32 to vector<1x2xi32>
    %20 = arith.cmpi eq, %18, %19 : vector<1x2xi32>
    %c0_12 = arith.constant 0 : index
    %21 = memref.load %arg6[%c0_12] : memref<2xf32, #tpu.memory_space<smem>>
    %c1 = arith.constant 1 : index
    %22 = memref.load %arg6[%c1] : memref<2xf32, #tpu.memory_space<smem>>
    %23 = vector.broadcast %21 : f32 to vector<1x2xf32>
    %24 = vector.broadcast %22 : f32 to vector<1x2xf32>
    %25 = arith.select %20, %23, %24 : vector<1x2xi1>, vector<1x2xf32>
    %26 = tpu.iota {dimensions = array<i32: 0>} : vector<128x2xi32>
    %c1_i32 = arith.constant 1 : i32
    %27 = arith.muli %arg0, %c1_i32 : i32
    %c0_i32_13 = arith.constant 0 : i32
    %28 = arith.addi %27, %c0_i32_13 : i32
    %29 = arith.index_cast %28 : i32 to index
    %30 = memref.load %arg1[%29] : memref<2xi32, #tpu.memory_space<smem>>
    %31 = vector.broadcast %30 : i32 to vector<128x2xi32>
    %32 = arith.cmpi slt, %26, %31 : vector<128x2xi32>
    %33 = vector.broadcast %25 : vector<1x2xf32> to vector<128x2xf32>
    %34 = arith.addf %17, %33 : vector<128x2xf32>
    %cst_14 = arith.constant -1.000000e+30 : f32
    %35 = vector.broadcast %cst_14 : f32 to vector<128x2xf32>
    %36 = arith.select %32, %34, %35 : vector<128x2xi1>, vector<128x2xf32>
    %cst_15 = arith.constant dense<0xFF800000> : vector<2xf32>
    %37 = vector.multi_reduction <maximumf>, %36, %cst_15 [0] : vector<128x2xf32> to vector<2xf32>
    %38 = vector.shape_cast %37 : vector<2xf32> to vector<1x2xf32>
    %39 = vector.broadcast %38 : vector<1x2xf32> to vector<128x2xf32>
    %40 = arith.subf %36, %39 : vector<128x2xf32>
    %41 = math.exp %40 : vector<128x2xf32>
    %cst_16 = arith.constant dense<0.000000e+00> : vector<2xf32>
    %42 = vector.multi_reduction <add>, %41, %cst_16 [0] : vector<128x2xf32> to vector<2xf32>
    %43 = vector.shape_cast %42 : vector<2xf32> to vector<1x2xf32>
    %44 = math.log %43 : vector<1x2xf32>
    %45 = vector.broadcast %44 : vector<1x2xf32> to vector<128x2xf32>
    %46 = arith.subf %40, %45 : vector<128x2xf32>
    %c0_17 = arith.constant 0 : index
    %c0_18 = arith.constant 0 : index
    %c0_19 = arith.constant 0 : index
    %47 = vector.load %arg7[%c0_17, %c0_18, %c0_19] : memref<1x128x2xf32, #tpu.memory_space<vmem>>, vector<1x128x2xf32>
    %48 = vector.shape_cast %47 : vector<1x128x2xf32> to vector<128x2xf32>
    %49 = vector.shape_cast %46 : vector<128x2xf32> to vector<1x128x2xf32>
    tpu.vector_store %arg7[%c0_17, %c0_18, %c0_19], %49 {strides = array<i32>} : memref<1x128x2xf32, #tpu.memory_space<vmem>>, vector<1x128x2xf32>,
    return
  }
  func.func @transform_0(%arg0: i32, %arg1: memref<2xi32, #tpu.memory_space<smem>>) -> (i32, i32, i32) {
    %c0_i32 = arith.constant 0 : i32
    %c0_i32_0 = arith.constant 0 : i32
    %c0_i32_1 = arith.constant 0 : i32
    return %arg0, %c0_i32, %c0_i32_0 : i32, i32, i32
  }
  func.func @transform_1(%arg0: i32, %arg1: memref<2xi32, #tpu.memory_space<smem>>) -> (i32, i32, i32) {
    %c0_i32 = arith.constant 0 : i32
    %c0_i32_0 = arith.constant 0 : i32
    %c0_i32_1 = arith.constant 0 : i32
    return %arg0, %c0_i32, %c0_i32_0 : i32, i32, i32
  }
  func.func @transform_2(%arg0: i32, %arg1: memref<2xi32, #tpu.memory_space<smem>>) -> (i32, i32, i32) {
    %c0_i32 = arith.constant 0 : i32
    %c0_i32_0 = arith.constant 0 : i32
    %c0_i32_1 = arith.constant 0 : i32
    return %arg0, %c0_i32, %c0_i32_0 : i32, i32, i32
  }
  func.func @transform_3(%arg0: i32, %arg1: memref<2xi32, #tpu.memory_space<smem>>) -> (i32, i32) {
    %c0_i32 = arith.constant 0 : i32
    %c0_i32_0 = arith.constant 0 : i32
    %c0_i32_1 = arith.constant 0 : i32
    return %c0_i32, %c0_i32_0 : i32, i32
  }
  func.func @transform_4(%arg0: i32, %arg1: memref<2xi32, #tpu.memory_space<smem>>) -> i32 {
    %c0_i32 = arith.constant 0 : i32
    %c0_i32_0 = arith.constant 0 : i32
    return %c0_i32 : i32
  }
  func.func @transform_5(%arg0: i32, %arg1: memref<2xi32, #tpu.memory_space<smem>>) -> (i32, i32, i32) {
    %c0_i32 = arith.constant 0 : i32
    %c0_i32_0 = arith.constant 0 : i32
    %c0_i32_1 = arith.constant 0 : i32
    return %arg0, %c0_i32, %c0_i32_0 : i32, i32, i32
  }
}

</mosaic_0001>

<llo_original>
// kernel: custom-call.1
$region0: #{custom-call.1}
  %s0 = inlined_call_operand.vmem [shape: f32[2,16], index: 0, kind: output, shape index: {}]

// kernel: custom-call
$region0: #{custom-call}
  %s0 = inlined_call_operand.vmem [shape: bf16[2,16], index: 0, kind: output, shape index: {}]

// kernel: bidaf_output_forward.1
$region0: #{bidaf_output_forward.1}
  #allocation0 [shape = 'u32[]', space=smem, size = 0x4, offset = 0x4, fixed_abs, tag = 'smem constant byte address 0x4 - core index']
  #allocation1 [shape = 'u32[144,128]{1,0:T(1,128)}', space=vmem, size = 0x12000, scoped, tag = 'internal scratch']
  #allocation2 [shape = 's32[1]{0}', space=sflag, size = 0x4, scoped, tag = 'scoped memory for bidaf_output_forward.1']
  #allocation3 [shape = 'u8[512]{0}', space=smem, size = 0x200, scoped, tag = 'prefetched SMEM operand 0']
  %s0 = inlined_call_operand.vmem [shape: s32[2], index: 0, kind: input, shape index: {}]
  %s1 = inlined_call_operand.vmem [shape: f32[2,128,128], index: 1, kind: input, shape index: {}]
  %s2 = inlined_call_operand.vmem [shape: f32[2,128,32], index: 2, kind: input, shape index: {}]
  %s3 = inlined_call_operand.vmem [shape: f32[2,128,32], index: 3, kind: input, shape index: {}]
  %s4 = inlined_call_operand.vmem [shape: bf16[192,2], index: 4, kind: input, shape index: {}]
  %s5 = inlined_call_operand.vmem [shape: f32[2], index: 5, kind: input, shape index: {}]
  %s6 = inlined_call_operand.vmem [shape: f32[2,128,2], index: 6, kind: output, shape index: {}]
  %s7 = sld [smem:[#allocation0]]
  $region57: #{bidaf_output_forward.1} parent=0
    _
  %s9 = ssub.s32 1, %s7
  %s10 = scalar_select 0, %s9, %s7
  %s11 = sshll.u32 %s0, 4
  %s12 = int_to_ptr.vmem [resolvable:$true] %s11
  %14 = dma.vmem_to_smem %s12, 16, [#allocation3], [#allocation2]
  %15 = dma.done [#allocation2], 16
  %16 = sfence
  $region1: #{bidaf_output_forward.1} parent=0
    #allocation4 [shape = 'u8[512]{0}', space=smem, size = 0x200, scoped, tag = 'input window, operand 5, single buffered']
    #allocation5 [shape = 's32[2]{0}', space=sflag, size = 0x8, scoped, tag = 'scoped memory for bidaf_output_forward.1']
    %17 = vsyncpa [#allocation5], 0
    loop: start=0, step=1, limit=4
    $region2: #{bidaf_output_forward.1} parent=1 // loop_pre_header
      _
    $region3: #{bidaf_output_forward.1} parent=1 // loop_header
      %s19 = sphi 0, %s23
      %p20 = scmp.ge.s32.totalorder %s19, 4
      %s29 = sphi 0, %s31
      %s32 = sphi 0, %s29
      %s33 = sphi 0, %s32
      %s49 = sphi 0, %s33
      %s55 = sphi 0, %s57
      %s58 = sphi 0, %s55
      %s59 = sphi 0, %s58
      %s75 = sphi 0, %s59
      %s81 = sphi 0, %s83
      %s84 = sphi 0, %s81
      %s85 = sphi 0, %s84
      %s101 = sphi 0, %s85
      %s105 = sphi 0, %s105
      %s107 = sphi 0, %s105
      %s108 = sphi 0, %s107
      %s122 = sphi 0, %s108
      %s126 = sphi 0, %s126
      %s128 = sphi 0, %s126
      %s129 = sphi 0, %s128
      %s143 = sphi 0, %s129
      %s149 = sphi 0, %s151
      %s152 = sphi 0, %s149
      %s153 = sphi 0, %s152
      %s169 = sphi 0, %s153
    $region4: #{bidaf_output_forward.1} parent=1 // loop_header_branch
      %22 = sbr.rel (%p20) target = $region8
    $region5: #{bidaf_output_forward.1} parent=1 // loop_body
      %s24 = ssub.s32 %s19, 1
      %s25 = ssub.s32 %s19, 2
      %s26 = sadd.s32 %s19, 1
      %s27 = ssub.s32 %s19, %s26
      %p28 = scmp.eq.s32.totalorder %s27, 0
      %s30 = sadd.s32 %s29, 1
      %s31 = scalar_select %p28, %s29, %s30
      %p34 = pneg %p28
      %p35 = scmp.eq.s32.totalorder %s19, 1
      %p36 = por %p34, %p35
      %p37 = scmp.ne.s32.totalorder %s29, %s32
      %p38 = scmp.eq.s32.totalorder %s19, 0
      %p39 = por %p37, %p38
      %p40 = scmp.ne.s32.totalorder %s29, %s32
      %p41 = scmp.eq.s32.totalorder %s24, 1
      %p42 = por %p40, %p41
      %p43 = scmp.ne.s32.totalorder %s32, %s33
      %p44 = scmp.eq.s32.totalorder %s24, 0
      %p45 = por %p43, %p44
      %p46 = scmp.ne.s32.totalorder %s32, %s33
      %p47 = scmp.eq.s32.totalorder %s25, 1
      %p48 = por %p46, %p47
      %p50 = scmp.ne.s32.totalorder %s33, %s49
      %p51 = scmp.eq.s32.totalorder %s25, 0
      %p52 = por %p50, %p51
      %s53 = ssub.s32 %s19, %s26
      %p54 = scmp.eq.s32.totalorder %s53, 0
      %s56 = sadd.s32 %s55, 1
      %s57 = scalar_select %p54, %s55, %s56
      %p60 = pneg %p54
      %p61 = scmp.eq.s32.totalorder %s19, 1
      %p62 = por %p60, %p61
      %p63 = scmp.ne.s32.totalorder %s55, %s58
      %p64 = scmp.eq.s32.totalorder %s19, 0
      %p65 = por %p63, %p64
      %p66 = scmp.ne.s32.totalorder %s55, %s58
      %p67 = scmp.eq.s32.totalorder %s24, 1
      %p68 = por %p66, %p67
      %p69 = scmp.ne.s32.totalorder %s58, %s59
      %p70 = scmp.eq.s32.totalorder %s24, 0
      %p71 = por %p69, %p70
      %p72 = scmp.ne.s32.totalorder %s58, %s59
      %p73 = scmp.eq.s32.totalorder %s25, 1
      %p74 = por %p72, %p73
      %p76 = scmp.ne.s32.totalorder %s59, %s75
      %p77 = scmp.eq.s32.totalorder %s25, 0
      %p78 = por %p76, %p77
      %s79 = ssub.s32 %s19, %s26
      %p80 = scmp.eq.s32.totalorder %s79, 0
      %s82 = sadd.s32 %s81, 1
      %s83 = scalar_select %p80, %s81, %s82
      %p86 = pneg %p80
      %p87 = scmp.eq.s32.totalorder %s19, 1
      %p88 = por %p86, %p87
      %p89 = scmp.ne.s32.totalorder %s81, %s84
      %p90 = scmp.eq.s32.totalorder %s19, 0
      %p91 = por %p89, %p90
      %p92 = scmp.ne.s32.totalorder %s81, %s84
      %p93 = scmp.eq.s32.totalorder %s24, 1
      %p94 = por %p92, %p93
      %p95 = scmp.ne.s32.totalorder %s84, %s85
      %p96 = scmp.eq.s32.totalorder %s24, 0
      %p97 = por %p95, %p96
      %p98 = scmp.ne.s32.totalorder %s84, %s85
      %p99 = scmp.eq.s32.totalorder %s25, 1
      %p100 = por %p98, %p99
      %p102 = scmp.ne.s32.totalorder %s85, %s101
      %p103 = scmp.eq.s32.totalorder %s25, 0
      %p104 = por %p102, %p103
      %s106 = sadd.s32 %s105, 1
      %p109 = scmp.eq.s32.totalorder %s19, 1
      %p110 = scmp.ne.s32.totalorder %s105, %s107
      %p111 = scmp.eq.s32.totalorder %s19, 0
      %p112 = por %p110, %p111
      %p113 = scmp.ne.s32.totalorder %s105, %s107
      %p114 = scmp.eq.s32.totalorder %s24, 1
      %p115 = por %p113, %p114
      %p116 = scmp.ne.s32.totalorder %s107, %s108
      %p117 = scmp.eq.s32.totalorder %s24, 0
      %p118 = por %p116, %p117
      %p119 = scmp.ne.s32.totalorder %s107, %s108
      %p120 = scmp.eq.s32.totalorder %s25, 1
      %p121 = por %p119, %p120
      %p123 = scmp.ne.s32.totalorder %s108, %s122
      %p124 = scmp.eq.s32.totalorder %s25, 0
      %p125 = por %p123, %p124
      %s127 = sadd.s32 %s126, 1
      %p130 = scmp.eq.s32.totalorder %s19, 1
      %p131 = scmp.ne.s32.totalorder %s126, %s128
      %p132 = scmp.eq.s32.totalorder %s19, 0
      %p133 = por %p131, %p132
      %p134 = scmp.ne.s32.totalorder %s126, %s128
      %p135 = scmp.eq.s32.totalorder %s24, 1
      %p136 = por %p134, %p135
      %p137 = scmp.ne.s32.totalorder %s128, %s129
      %p138 = scmp.eq.s32.totalorder %s24, 0
      %p139 = por %p137, %p138
      %p140 = scmp.ne.s32.totalorder %s128, %s129
      %p141 = scmp.eq.s32.totalorder %s25, 1
      %p142 = por %p140, %p141
      %p144 = scmp.ne.s32.totalorder %s129, %s143
      %p145 = scmp.eq.s32.totalorder %s25, 0
      %p146 = por %p144, %p145
      %s147 = ssub.s32 %s19, %s26
      %p148 = scmp.eq.s32.totalorder %s147, 0
      %s150 = sadd.s32 %s149, 1
      %s151 = scalar_select %p148, %s149, %s150
      %p154 = pneg %p148
      %p155 = scmp.eq.s32.totalorder %s19, 1
      %p156 = por %p154, %p155
      %p157 = scmp.ne.s32.totalorder %s149, %s152
      %p158 = scmp.eq.s32.totalorder %s19, 0
      %p159 = por %p157, %p158
      %p160 = scmp.ne.s32.totalorder %s149, %s152
      %p161 = scmp.eq.s32.totalorder %s24, 1
      %p162 = por %p160, %p161
      %p163 = scmp.ne.s32.totalorder %s152, %s153
      %p164 = scmp.eq.s32.totalorder %s24, 0
      %p165 = por %p163, %p164
      %p166 = scmp.ne.s32.totalorder %s152, %s153
      %p167 = scmp.eq.s32.totalorder %s25, 1
      %p168 = por %p166, %p167
      %p170 = scmp.ne.s32.totalorder %s153, %s169
      %p171 = scmp.eq.s32.totalorder %s25, 0
      %p172 = por %p170, %p171
      %p173 = scmp.le.s32.totalorder 1, %s19
      %p174 = scmp.lt.s32.totalorder %s19, 3
      %p175 = pnand %p173, %p174
      %p176 = pneg %p175
      // Predicated region
      $region9: #{bidaf_output_forward.1} parent=5 // pred_check
        _
      $region10: #{bidaf_output_forward.1} parent=5 // pred_check_branch
        %178 = sbr.rel (%p175) target = $region12
      $region11: #{bidaf_output_forward.1} parent=5 // pred_region
        %s179 = ssub.s32 %s19, 1
        // Predicated region
        $region13: #{bidaf_output_forward.1} parent=11 // pred_check
          %p180 = pneg %p118
        $region14: #{bidaf_output_forward.1} parent=11 // pred_check_branch
          %182 = sbr.rel (%p180) target = $region16
        $region15: #{bidaf_output_forward.1} parent=11 // pred_region
          _
        $region16: #{bidaf_output_forward.1} parent=11 // pred_fallthru
          _
        // Predicated region
        $region17: #{bidaf_output_forward.1} parent=11 // pred_check
          %p183 = pneg %p139
        $region18: #{bidaf_output_forward.1} parent=11 // pred_check_branch
          %185 = sbr.rel (%p183) target = $region20
        $region19: #{bidaf_output_forward.1} parent=11 // pred_region
          %s187 = ssub.s32 16, 16
          %188 = vsyncadd [#allocation5], %s187
          %s190 = sshll.u32 %s5, 4
          %s191 = int_to_ptr.vmem [resolvable:$true] %s190
          %193 = dma.vmem_to_smem %s191, 16, [#allocation4], [#allocation5]
        $region20: #{bidaf_output_forward.1} parent=11 // pred_fallthru
          _
      $region12: #{bidaf_output_forward.1} parent=5 // pred_fallthru
        _
      %p194 = scmp.lt.s32.totalorder %s19, 2
      // Predicated region
      $region21: #{bidaf_output_forward.1} parent=5 // pred_check
        %p195 = pneg %p194
      $region22: #{bidaf_output_forward.1} parent=5 // pred_check_branch
        %197 = sbr.rel (%p195) target = $region24
      $region23: #{bidaf_output_forward.1} parent=5 // pred_region
        // Predicated region
        $region25: #{bidaf_output_forward.1} parent=23 // pred_check
          %p198 = pneg %p39
        $region26: #{bidaf_output_forward.1} parent=23 // pred_check_branch
          %200 = sbr.rel (%p198) target = $region28
        $region27: #{bidaf_output_forward.1} parent=23 // pred_region
          %p201 = scmp.lt.s32.totalorder %s19, 1
          %s202 = scalar_select %p201, %s19, 1
          %s203 = smul.addr %s202, 16
          %s204 = smul.addr %s203, 8
          %s205 = scalar_lea.vmem %s1, %s204
        $region28: #{bidaf_output_forward.1} parent=23 // pred_fallthru
          _
        // Predicated region
        $region29: #{bidaf_output_forward.1} parent=23 // pred_check
          %p206 = pneg %p65
        $region30: #{bidaf_output_forward.1} parent=23 // pred_check_branch
          %208 = sbr.rel (%p206) target = $region32
        $region31: #{bidaf_output_forward.1} parent=23 // pred_region
          %p209 = scmp.lt.s32.totalorder %s19, 1
          %s210 = scalar_select %p209, %s19, 1
          %s211 = smul.addr %s210, 16
          %s212 = smul.addr %s211, 8
          %s213 = scalar_lea.vmem %s2, %s212
        $region32: #{bidaf_output_forward.1} parent=23 // pred_fallthru
          _
        // Predicated region
        $region33: #{bidaf_output_forward.1} parent=23 // pred_check
          %p214 = pneg %p91
        $region34: #{bidaf_output_forward.1} parent=23 // pred_check_branch
          %216 = sbr.rel (%p214) target = $region36
        $region35: #{bidaf_output_forward.1} parent=23 // pred_region
          %p217 = scmp.lt.s32.totalorder %s19, 1
          %s218 = scalar_select %p217, %s19, 1
          %s219 = smul.addr %s218, 16
          %s220 = smul.addr %s219, 8
          %s221 = scalar_lea.vmem %s3, %s220
        $region36: #{bidaf_output_forward.1} parent=23 // pred_fallthru
          _
      $region24: #{bidaf_output_forward.1} parent=5 // pred_fallthru
        _
      %p222 = scmp.le.s32.totalorder 1, %s19
      %p223 = scmp.lt.s32.totalorder %s19, 3
      %p224 = pnand %p222, %p223
      %p225 = pneg %p224
      // Predicated region
      $region37: #{bidaf_output_forward.1} parent=5 // pred_check
        _
      $region38: #{bidaf_output_forward.1} parent=5 // pred_check_branch
        %227 = sbr.rel (%p224) target = $region40
      $region39: #{bidaf_output_forward.1} parent=5 // pred_region
        %s228 = ssub.s32 %s19, 1
        // Predicated region
        $region41: #{bidaf_output_forward.1} parent=39 // pred_check
          %p229 = pneg %p139
        $region42: #{bidaf_output_forward.1} parent=39 // pred_check_branch
          %231 = sbr.rel (%p229) target = $region44
        $region43: #{bidaf_output_forward.1} parent=39 // pred_region
          %232 = dma.done [#allocation5], 16
        $region44: #{bidaf_output_forward.1} parent=39 // pred_fallthru
          _
        %233 = sfence
        %p234 = scmp.lt.s32.totalorder %s24, 1
        %s235 = scalar_select %p234, %s24, 1
        %s236 = smul.addr %s235, 16
        %s237 = smul.addr %s236, 8
        %s238 = scalar_lea.vmem %s1, %s237
        %p239 = pneg %p45
        %p240 = pneg %p42
        %p241 = scmp.lt.s32.totalorder %s24, 1
        %s242 = scalar_select %p241, %s24, 1
        %s243 = smul.addr %s242, 16
        %s244 = smul.addr %s243, 8
        %s245 = scalar_lea.vmem %s2, %s244
        %p246 = pneg %p71
        %p247 = pneg %p68
        %p248 = scmp.lt.s32.totalorder %s24, 1
        %s249 = scalar_select %p248, %s24, 1
        %s250 = smul.addr %s249, 16
        %s251 = smul.addr %s250, 8
        %s252 = scalar_lea.vmem %s3, %s251
        %p253 = pneg %p97
        %p254 = pneg %p94
        %p255 = pneg %p118
        %p256 = pneg %p115
        %p257 = pneg %p139
        %p258 = pneg %p136
        %p259 = pneg %p165
        %p260 = pneg %p162
        %p261 = scmp.lt.s32.totalorder %s24, 1
        %s262 = scalar_select %p261, %s24, 1
        %s263 = smul.addr %s262, 16
        %s264 = smul.addr %s263, 8
        %s265 = scalar_lea.vmem %s6, %s264
        %p266 = scmp.lt.s32.totalorder %s24, 1
        %s267 = scalar_select %p266, %s24, 1
        %s268 = smul.addr %s267, 16
        %s269 = smul.addr %s268, 8
        %s270 = scalar_lea.vmem %s1, %s269
        %p271 = scmp.lt.s32.totalorder %s24, 1
        %s272 = scalar_select %p271, %s24, 1
        %s273 = smul.addr %s272, 16
        %s274 = smul.addr %s273, 8
        %s275 = scalar_lea.vmem %s2, %s274
        %p276 = scmp.lt.s32.totalorder %s24, 1
        %s277 = scalar_select %p276, %s24, 1
        %s278 = smul.addr %s277, 16
        %s279 = smul.addr %s278, 8
        %s280 = scalar_lea.vmem %s3, %s279
        %p281 = scmp.lt.s32.totalorder %s24, 1
        %s282 = scalar_select %p281, %s24, 1
        %s283 = smul.addr %s282, 16
        %s284 = smul.addr %s283, 8
        %s285 = scalar_lea.vmem %s6, %s284
        %v287 = vld [vmem:[%s270] sm:$0xff]
        %v288 = vld [vmem:[%s270 + $0x8] sm:$0xff]
        %v289 = vld [vmem:[%s270 + $0x10] sm:$0xff]
        %v290 = vld [vmem:[%s270 + $0x18] sm:$0xff]
        %v291 = vld [vmem:[%s270 + $0x20] sm:$0xff]
        %v292 = vld [vmem:[%s270 + $0x28] sm:$0xff]
        %v293 = vld [vmem:[%s270 + $0x30] sm:$0xff]
        %v294 = vld [vmem:[%s270 + $0x38] sm:$0xff]
        %v295 = vld [vmem:[%s270 + $0x40] sm:$0xff]
        %v296 = vld [vmem:[%s270 + $0x48] sm:$0xff]
        %v297 = vld [vmem:[%s270 + $0x50] sm:$0xff]
        %v298 = vld [vmem:[%s270 + $0x58] sm:$0xff]
        %v299 = vld [vmem:[%s270 + $0x60] sm:$0xff]
        %v300 = vld [vmem:[%s270 + $0x68] sm:$0xff]
        %v301 = vld [vmem:[%s270 + $0x70] sm:$0xff]
        %v302 = vld [vmem:[%s270 + $0x78] sm:$0xff]
        %v303 = vpack.c.bf16 %v288, %v287
        %v304 = vpack.c.bf16 %v290, %v289
        %v305 = vpack.c.bf16 %v292, %v291
        %v306 = vpack.c.bf16 %v294, %v293
        %v307 = vpack.c.bf16 %v296, %v295
        %v308 = vpack.c.bf16 %v298, %v297
        %v309 = vpack.c.bf16 %v300, %v299
        %v310 = vpack.c.bf16 %v302, %v301
        %v311 = vld [vmem:[%s275] sm:$0xff]
        %v312 = vld [vmem:[%s275 + $0x8] sm:$0xff]
        %v313 = vld [vmem:[%s275 + $0x10] sm:$0xff]
        %v314 = vld [vmem:[%s275 + $0x18] sm:$0xff]
        %v315 = vld [vmem:[%s275 + $0x20] sm:$0xff]
        %v316 = vld [vmem:[%s275 + $0x28] sm:$0xff]
        %v317 = vld [vmem:[%s275 + $0x30] sm:$0xff]
        %v318 = vld [vmem:[%s275 + $0x38] sm:$0xff]
        %v319 = vld [vmem:[%s275 + $0x40] sm:$0xff]
        %v320 = vld [vmem:[%s275 + $0x48] sm:$0xff]
        %v321 = vld [vmem:[%s275 + $0x50] sm:$0xff]
        %v322 = vld [vmem:[%s275 + $0x58] sm:$0xff]
        %v323 = vld [vmem:[%s275 + $0x60] sm:$0xff]
        %v324 = vld [vmem:[%s275 + $0x68] sm:$0xff]
        %v325 = vld [vmem:[%s275 + $0x70] sm:$0xff]
        %v326 = vld [vmem:[%s275 + $0x78] sm:$0xff]
        %v327 = vpack.c.bf16 %v312, %v311
        %v328 = vpack.c.bf16 %v314, %v313
        %v329 = vpack.c.bf16 %v316, %v315
        %v330 = vpack.c.bf16 %v318, %v317
        %v331 = vpack.c.bf16 %v320, %v319
        %v332 = vpack.c.bf16 %v322, %v321
        %v333 = vpack.c.bf16 %v324, %v323
        %v334 = vpack.c.bf16 %v326, %v325
        %v335 = vld [vmem:[%s280] sm:$0xff]
        %v336 = vld [vmem:[%s280 + $0x8] sm:$0xff]
        %v337 = vld [vmem:[%s280 + $0x10] sm:$0xff]
        %v338 = vld [vmem:[%s280 + $0x18] sm:$0xff]
        %v339 = vld [vmem:[%s280 + $0x20] sm:$0xff]
        %v340 = vld [vmem:[%s280 + $0x28] sm:$0xff]
        %v341 = vld [vmem:[%s280 + $0x30] sm:$0xff]
        %v342 = vld [vmem:[%s280 + $0x38] sm:$0xff]
        %v343 = vld [vmem:[%s280 + $0x40] sm:$0xff]
        %v344 = vld [vmem:[%s280 + $0x48] sm:$0xff]
        %v345 = vld [vmem:[%s280 + $0x50] sm:$0xff]
        %v346 = vld [vmem:[%s280 + $0x58] sm:$0xff]
        %v347 = vld [vmem:[%s280 + $0x60] sm:$0xff]
        %v348 = vld [vmem:[%s280 + $0x68] sm:$0xff]
        %v349 = vld [vmem:[%s280 + $0x70] sm:$0xff]
        %v350 = vld [vmem:[%s280 + $0x78] sm:$0xff]
        %v351 = vpack.c.bf16 %v336, %v335
        %v352 = vpack.c.bf16 %v338, %v337
        %v353 = vpack.c.bf16 %v340, %v339
        %v354 = vpack.c.bf16 %v342, %v341
        %v355 = vpack.c.bf16 %v344, %v343
        %v356 = vpack.c.bf16 %v346, %v345
        %v357 = vpack.c.bf16 %v348, %v347
        %v358 = vpack.c.bf16 %v350, %v349
        %v359 = vld [vmem:[%s4] sm:$0xf]
        %v360 = vld [vmem:[%s4 + $0x4] sm:$0xf]
        %v361 = vld [vmem:[%s4 + $0x8] sm:$0xf]
        %v362 = vld [vmem:[%s4 + $0xc] sm:$0xf]
        %v363 = vld [vmem:[%s4 + $0x10] sm:$0xf]
        %v364 = vld [vmem:[%s4 + $0x14] sm:$0xf]
        %v365 = vld [vmem:[%s4 + $0x18] sm:$0xf]
        %v366 = vld [vmem:[%s4 + $0x1c] sm:$0xf]
        %v367 = vld [vmem:[%s4 + $0x20] sm:$0xf]
        %v368 = vld [vmem:[%s4 + $0x24] sm:$0xf]
        %v369 = vld [vmem:[%s4 + $0x28] sm:$0xf]
        %v370 = vld [vmem:[%s4 + $0x2c] sm:$0xf]
        %v371 = vld [vmem:[%s4 + $0x30] sm:$0xf]
        %v372 = vld [vmem:[%s4 + $0x34] sm:$0xf]
        %v373 = vld [vmem:[%s4 + $0x38] sm:$0xf]
        %v374 = vld [vmem:[%s4 + $0x3c] sm:$0xf]
        %v375 = vld [vmem:[%s4 + $0x40] sm:$0xf]
        %v376 = vld [vmem:[%s4 + $0x44] sm:$0xf]
        %v377 = vld [vmem:[%s4 + $0x48] sm:$0xf]
        %v378 = vld [vmem:[%s4 + $0x4c] sm:$0xf]
        %v379 = vld [vmem:[%s4 + $0x50] sm:$0xf]
        %v380 = vld [vmem:[%s4 + $0x54] sm:$0xf]
        %v381 = vld [vmem:[%s4 + $0x58] sm:$0xf]
        %v382 = vld [vmem:[%s4 + $0x5c] sm:$0xf]
        %v387 = vunpack.c.l.b16 %v375
        %v388 = vunpack.c.l.b16 %v376
        %v389 = vunpack.c.l.b16 %v377
        %v390 = vunpack.c.l.b16 %v378
        %v391 = vpack.c.b16 %v388, %v387
        %v392 = vpack.c.b16 %v390, %v389
        %vm395 = vcmask 261120
        %v397 = vsel %vm395, %v327, 0
        %v400 = vsel %vm395, %v328, 0
        %v403 = vsel %vm395, %v329, 0
        %v406 = vsel %vm395, %v330, 0
        %v409 = vsel %vm395, %v331, 0
        %v412 = vsel %vm395, %v332, 0
        %v415 = vsel %vm395, %v333, 0
        %v418 = vsel %vm395, %v334, 0
        %420 = vmatprep.subr.bf16.mxu0 0
        %421 = vmatpush1.bf16.msra.mxu0 %v391
        %422 = vmatprep.subr.bf16.mxu0 0
        %423 = vmatpush1.bf16.msra.mxu0 %v392
        %424 = vmatprep.subr.bf16.mxu0 0
        %425 = vmatpush1.bf16.msra.mxu0 0
        %426 = vmatprep.subr.bf16.mxu0 0
        %427 = vmatpush1.bf16.msra.mxu0 0
        %428 = vmatprep.subr.bf16.mxu0 0
        %429 = vmatpush1.bf16.msra.mxu0 0
        %430 = vmatprep.subr.bf16.mxu0 0
        %431 = vmatpush1.bf16.msra.mxu0 0
        %432 = vmatprep.subr.bf16.mxu0 0
        %433 = vmatpush1.bf16.msra.mxu0 0
        %434 = vmatprep.subr.bf16.mxu0 0
        %435 = vmatpush1.bf16.msra.mxu0 0
        %436 = vmatprep.subr.bf16.mxu0 0
        %437 = vmatpush1.bf16.msra.mxu0 0
        %438 = vmatprep.subr.bf16.mxu0 0
        %439 = vmatpush1.bf16.msra.mxu0 0
        %440 = vmatprep.subr.bf16.mxu0 0
        %441 = vmatpush1.bf16.msra.mxu0 0
        %442 = vmatprep.subr.bf16.mxu0 0
        %443 = vmatpush1.bf16.msra.mxu0 0
        %444 = vmatprep.subr.bf16.mxu0 0
        %445 = vmatpush1.bf16.msra.mxu0 0
        %446 = vmatprep.subr.bf16.mxu0 0
        %447 = vmatpush1.bf16.msra.mxu0 0
        %448 = vmatprep.subr.bf16.mxu0 0
        %449 = vmatpush1.bf16.msra.mxu0 0
        %450 = vmatprep.subr.bf16.mxu0 0
        %451 = vmatpush1.bf16.msra.mxu0 0
        %452 = vmatprep.mubr.bf16.mxu0 0
        %453 = vmatmul.mubr.bf16.gmra.mrb[0].mxu0 %v397
        %v454 = vpop.f32.mrb[0].mxu0
        %v455 = vadd.f32 0.0, %v454
        %v456 = vpop.f32.mrb[0].mxu0
        %v457 = vpop.f32.mrb[0].mxu0
        %v458 = vadd.f32 0.0, %v457
        %v459 = vpop.f32.mrb[0].mxu0
        %460 = vmatprep.mubr.bf16.mxu0 0
        %461 = vmatmul.mubr.bf16.gmra.mrb[0].mxu0 %v400
        %v462 = vpop.f32.mrb[0].mxu0
        %v463 = vadd.f32 0.0, %v462
        %v464 = vpop.f32.mrb[0].mxu0
        %v465 = vpop.f32.mrb[0].mxu0
        %v466 = vadd.f32 0.0, %v465
        %v467 = vpop.f32.mrb[0].mxu0
        %468 = vmatprep.mubr.bf16.mxu0 0
        %469 = vmatmul.mubr.bf16.gmra.mrb[0].mxu0 %v403
        %v470 = vpop.f32.mrb[0].mxu0
        %v471 = vadd.f32 0.0, %v470
        %v472 = vpop.f32.mrb[0].mxu0
        %v473 = vpop.f32.mrb[0].mxu0
        %v474 = vadd.f32 0.0, %v473
        %v475 = vpop.f32.mrb[0].mxu0
        %476 = vmatprep.mubr.bf16.mxu0 0
        %477 = vmatmul.mubr.bf16.gmra.mrb[0].mxu0 %v406
        %v478 = vpop.f32.mrb[0].mxu0
        %v479 = vadd.f32 0.0, %v478
        %v480 = vpop.f32.mrb[0].mxu0
        %v481 = vpop.f32.mrb[0].mxu0
        %v482 = vadd.f32 0.0, %v481
        %v483 = vpop.f32.mrb[0].mxu0
        %484 = vmatprep.mubr.bf16.mxu0 0
        %485 = vmatmul.mubr.bf16.gmra.mrb[0].mxu0 %v409
        %v486 = vpop.f32.mrb[0].mxu0
        %v487 = vadd.f32 0.0, %v486
        %v488 = vpop.f32.mrb[0].mxu0
        %v489 = vpop.f32.mrb[0].mxu0
        %v490 = vadd.f32 0.0, %v489
        %v491 = vpop.f32.mrb[0].mxu0
        %492 = vmatprep.mubr.bf16.mxu0 0
        %493 = vmatmul.mubr.bf16.gmra.mrb[0].mxu0 %v412
        %v494 = vpop.f32.mrb[0].mxu0
        %v495 = vadd.f32 0.0, %v494
        %v496 = vpop.f32.mrb[0].mxu0
        %v497 = vpop.f32.mrb[0].mxu0
        %v498 = vadd.f32 0.0, %v497
        %v499 = vpop.f32.mrb[0].mxu0
        %500 = vmatprep.mubr.bf16.mxu0 0
        %501 = vmatmul.mubr.bf16.gmra.mrb[0].mxu0 %v415
        %v502 = vpop.f32.mrb[0].mxu0
        %v503 = vadd.f32 0.0, %v502
        %v504 = vpop.f32.mrb[0].mxu0
        %v505 = vpop.f32.mrb[0].mxu0
        %v506 = vadd.f32 0.0, %v505
        %v507 = vpop.f32.mrb[0].mxu0
        %508 = vmatprep.mubr.bf16.mxu0 0
        %509 = vmatmul.mubr.bf16.gmra.mrb[0].mxu0 %v418
        %v510 = vpop.f32.mrb[0].mxu0
        %v511 = vadd.f32 0.0, %v510
        %v512 = vpop.f32.mrb[0].mxu0
        %v513 = vpop.f32.mrb[0].mxu0
        %v514 = vadd.f32 0.0, %v513
        %v515 = vpop.f32.mrb[0].mxu0
        %516 = vdwg.mxu0
        %v533 = vunpack.c.l.b16 %v359
        %v534 = vunpack.c.l.b16 %v360
        %v535 = vunpack.c.l.b16 %v361
        %v536 = vunpack.c.l.b16 %v362
        %v537 = vunpack.c.l.b16 %v363
        %v538 = vunpack.c.l.b16 %v364
        %v539 = vunpack.c.l.b16 %v365
        %v540 = vunpack.c.l.b16 %v366
        %v541 = vunpack.c.l.b16 %v367
        %v542 = vunpack.c.l.b16 %v368
        %v543 = vunpack.c.l.b16 %v369
        %v544 = vunpack.c.l.b16 %v370
        %v545 = vunpack.c.l.b16 %v371
        %v546 = vunpack.c.l.b16 %v372
        %v547 = vunpack.c.l.b16 %v373
        %v548 = vunpack.c.l.b16 %v374
        %v549 = vpack.c.b16 %v534, %v533
        %v550 = vpack.c.b16 %v536, %v535
        %v551 = vpack.c.b16 %v538, %v537
        %v552 = vpack.c.b16 %v540, %v539
        %v553 = vpack.c.b16 %v542, %v541
        %v554 = vpack.c.b16 %v544, %v543
        %v555 = vpack.c.b16 %v546, %v545
        %v556 = vpack.c.b16 %v548, %v547
        %565 = vmatprep.subr.bf16.mxu0 0
        %566 = vmatpush1.bf16.msra.mxu0 %v549
        %567 = vmatprep.subr.bf16.mxu0 0
        %568 = vmatpush1.bf16.msra.mxu0 %v550
        %569 = vmatprep.subr.bf16.mxu0 0
        %570 = vmatpush1.bf16.msra.mxu0 %v551
        %571 = vmatprep.subr.bf16.mxu0 0
        %572 = vmatpush1.bf16.msra.mxu0 %v552
        %573 = vmatprep.subr.bf16.mxu0 0
        %574 = vmatpush1.bf16.msra.mxu0 %v553
        %575 = vmatprep.subr.bf16.mxu0 0
        %576 = vmatpush1.bf16.msra.mxu0 %v554
        %577 = vmatprep.subr.bf16.mxu0 0
        %578 = vmatpush1.bf16.msra.mxu0 %v555
        %579 = vmatprep.subr.bf16.mxu0 0
        %580 = vmatpush1.bf16.msra.mxu0 %v556
        %581 = vmatprep.subr.bf16.mxu0 0
        %582 = vmatpush1.bf16.msra.mxu0 0
        %583 = vmatprep.subr.bf16.mxu0 0
        %584 = vmatpush1.bf16.msra.mxu0 0
        %585 = vmatprep.subr.bf16.mxu0 0
        %586 = vmatpush1.bf16.msra.mxu0 0
        %587 = vmatprep.subr.bf16.mxu0 0
        %588 = vmatpush1.bf16.msra.mxu0 0
        %589 = vmatprep.subr.bf16.mxu0 0
        %590 = vmatpush1.bf16.msra.mxu0 0
        %591 = vmatprep.subr.bf16.mxu0 0
        %592 = vmatpush1.bf16.msra.mxu0 0
        %593 = vmatprep.subr.bf16.mxu0 0
        %594 = vmatpush1.bf16.msra.mxu0 0
        %595 = vmatprep.subr.bf16.mxu0 0
        %596 = vmatpush1.bf16.msra.mxu0 0
        %597 = vmatprep.mubr.bf16.mxu0 0
        %598 = vmatmul.mubr.bf16.gmra.mrb[0].mxu0 %v303
        %v599 = vpop.f32.mrb[0].mxu0
        %v600 = vadd.f32 %v455, %v599
        %v601 = vpop.f32.mrb[0].mxu0
        %v602 = vpop.f32.mrb[0].mxu0
        %v603 = vadd.f32 %v458, %v602
        %v604 = vpop.f32.mrb[0].mxu0
        %605 = vmatprep.mubr.bf16.mxu0 0
        %606 = vmatmul.mubr.bf16.gmra.mrb[0].mxu0 %v304
        %v607 = vpop.f32.mrb[0].mxu0
        %v608 = vadd.f32 %v463, %v607
        %v609 = vpop.f32.mrb[0].mxu0
        %v610 = vpop.f32.mrb[0].mxu0
        %v611 = vadd.f32 %v466, %v610
        %v612 = vpop.f32.mrb[0].mxu0
        %613 = vmatprep.mubr.bf16.mxu0 0
        %614 = vmatmul.mubr.bf16.gmra.mrb[0].mxu0 %v305
        %v615 = vpop.f32.mrb[0].mxu0
        %v616 = vadd.f32 %v471, %v615
        %v617 = vpop.f32.mrb[0].mxu0
        %v618 = vpop.f32.mrb[0].mxu0
        %v619 = vadd.f32 %v474, %v618
        %v620 = vpop.f32.mrb[0].mxu0
        %621 = vmatprep.mubr.bf16.mxu0 0
        %622 = vmatmul.mubr.bf16.gmra.mrb[0].mxu0 %v306
        %v623 = vpop.f32.mrb[0].mxu0
        %v624 = vadd.f32 %v479, %v623
        %v625 = vpop.f32.mrb[0].mxu0
        %v626 = vpop.f32.mrb[0].mxu0
        %v627 = vadd.f32 %v482, %v626
        %v628 = vpop.f32.mrb[0].mxu0
        %629 = vmatprep.mubr.bf16.mxu0 0
        %630 = vmatmul.mubr.bf16.gmra.mrb[0].mxu0 %v307
        %v631 = vpop.f32.mrb[0].mxu0
        %v632 = vadd.f32 %v487, %v631
        %v633 = vpop.f32.mrb[0].mxu0
        %v634 = vpop.f32.mrb[0].mxu0
        %v635 = vadd.f32 %v490, %v634
        %v636 = vpop.f32.mrb[0].mxu0
        %637 = vmatprep.mubr.bf16.mxu0 0
        %638 = vmatmul.mubr.bf16.gmra.mrb[0].mxu0 %v308
        %v639 = vpop.f32.mrb[0].mxu0
        %v640 = vadd.f32 %v495, %v639
        %v641 = vpop.f32.mrb[0].mxu0
        %v642 = vpop.f32.mrb[0].mxu0
        %v643 = vadd.f32 %v498, %v642
        %v644 = vpop.f32.mrb[0].mxu0
        %645 = vmatprep.mubr.bf16.mxu0 0
        %646 = vmatmul.mubr.bf16.gmra.mrb[0].mxu0 %v309
        %v647 = vpop.f32.mrb[0].mxu0
        %v648 = vadd.f32 %v503, %v647
        %v649 = vpop.f32.mrb[0].mxu0
        %v650 = vpop.f32.mrb[0].mxu0
        %v651 = vadd.f32 %v506, %v650
        %v652 = vpop.f32.mrb[0].mxu0
        %653 = vmatprep.mubr.bf16.mxu0 0
        %654 = vmatmul.mubr.bf16.gmra.mrb[0].mxu0 %v310
        %v655 = vpop.f32.mrb[0].mxu0
        %v656 = vadd.f32 %v511, %v655
        %v657 = vpop.f32.mrb[0].mxu0
        %v658 = vpop.f32.mrb[0].mxu0
        %v659 = vadd.f32 %v514, %v658
        %v660 = vpop.f32.mrb[0].mxu0
        %661 = vdwg.mxu0
        %v666 = vunpack.c.l.b16 %v379
        %v667 = vunpack.c.l.b16 %v380
        %v668 = vunpack.c.l.b16 %v381
        %v669 = vunpack.c.l.b16 %v382
        %v670 = vpack.c.b16 %v667, %v666
        %v671 = vpack.c.b16 %v669, %v668
        %v675 = vsel %vm395, %v351, 0
        %v678 = vsel %vm395, %v352, 0
        %v681 = vsel %vm395, %v353, 0
        %v684 = vsel %vm395, %v354, 0
        %v687 = vsel %vm395, %v355, 0
        %v690 = vsel %vm395, %v356, 0
        %v693 = vsel %vm395, %v357, 0
        %v696 = vsel %vm395, %v358, 0
        %698 = vmatprep.subr.bf16.mxu0 0
        %699 = vmatpush1.bf16.msra.mxu0 %v670
        %700 = vmatprep.subr.bf16.mxu0 0
        %701 = vmatpush1.bf16.msra.mxu0 %v671
        %702 = vmatprep.subr.bf16.mxu0 0
        %703 = vmatpush1.bf16.msra.mxu0 0
        %704 = vmatprep.subr.bf16.mxu0 0
        %705 = vmatpush1.bf16.msra.mxu0 0
        %706 = vmatprep.subr.bf16.mxu0 0
        %707 = vmatpush1.bf16.msra.mxu0 0
        %708 = vmatprep.subr.bf16.mxu0 0
        %709 = vmatpush1.bf16.msra.mxu0 0
        %710 = vmatprep.subr.bf16.mxu0 0
        %711 = vmatpush1.bf16.msra.mxu0 0
        %712 = vmatprep.subr.bf16.mxu0 0
        %713 = vmatpush1.bf16.msra.mxu0 0
        %714 = vmatprep.subr.bf16.mxu0 0
        %715 = vmatpush1.bf16.msra.mxu0 0
        %716 = vmatprep.subr.bf16.mxu0 0
        %717 = vmatpush1.bf16.msra.mxu0 0
        %718 = vmatprep.subr.bf16.mxu0 0
        %719 = vmatpush1.bf16.msra.mxu0 0
        %720 = vmatprep.subr.bf16.mxu0 0
        %721 = vmatpush1.bf16.msra.mxu0 0
        %722 = vmatprep.subr.bf16.mxu0 0
        %723 = vmatpush1.bf16.msra.mxu0 0
        %724 = vmatprep.subr.bf16.mxu0 0
        %725 = vmatpush1.bf16.msra.mxu0 0
        %726 = vmatprep.subr.bf16.mxu0 0
        %727 = vmatpush1.bf16.msra.mxu0 0
        %728 = vmatprep.subr.bf16.mxu0 0
        %729 = vmatpush1.bf16.msra.mxu0 0
        %730 = vmatprep.mubr.bf16.mxu0 0
        %731 = vmatmul.mubr.bf16.gmra.mrb[0].mxu0 %v675
        %v732 = vpop.f32.mrb[0].mxu0
        %v733 = vadd.f32 0.0, %v732
        %v734 = vpop.f32.mrb[0].mxu0
        %v735 = vpop.f32.mrb[0].mxu0
        %v736 = vadd.f32 0.0, %v735
        %v737 = vpop.f32.mrb[0].mxu0
        %738 = vmatprep.mubr.bf16.mxu0 0
        %739 = vmatmul.mubr.bf16.gmra.mrb[0].mxu0 %v678
        %v740 = vpop.f32.mrb[0].mxu0
        %v741 = vadd.f32 0.0, %v740
        %v742 = vpop.f32.mrb[0].mxu0
        %v743 = vpop.f32.mrb[0].mxu0
        %v744 = vadd.f32 0.0, %v743
        %v745 = vpop.f32.mrb[0].mxu0
        %746 = vmatprep.mubr.bf16.mxu0 0
        %747 = vmatmul.mubr.bf16.gmra.mrb[0].mxu0 %v681
        %v748 = vpop.f32.mrb[0].mxu0
        %v749 = vadd.f32 0.0, %v748
        %v750 = vpop.f32.mrb[0].mxu0
        %v751 = vpop.f32.mrb[0].mxu0
        %v752 = vadd.f32 0.0, %v751
        %v753 = vpop.f32.mrb[0].mxu0
        %754 = vmatprep.mubr.bf16.mxu0 0
        %755 = vmatmul.mubr.bf16.gmra.mrb[0].mxu0 %v684
        %v756 = vpop.f32.mrb[0].mxu0
        %v757 = vadd.f32 0.0, %v756
        %v758 = vpop.f32.mrb[0].mxu0
        %v759 = vpop.f32.mrb[0].mxu0
        %v760 = vadd.f32 0.0, %v759
        %v761 = vpop.f32.mrb[0].mxu0
        %762 = vmatprep.mubr.bf16.mxu0 0
        %763 = vmatmul.mubr.bf16.gmra.mrb[0].mxu0 %v687
        %v764 = vpop.f32.mrb[0].mxu0
        %v765 = vadd.f32 0.0, %v764
        %v766 = vpop.f32.mrb[0].mxu0
        %v767 = vpop.f32.mrb[0].mxu0
        %v768 = vadd.f32 0.0, %v767
        %v769 = vpop.f32.mrb[0].mxu0
        %770 = vmatprep.mubr.bf16.mxu0 0
        %771 = vmatmul.mubr.bf16.gmra.mrb[0].mxu0 %v690
        %v772 = vpop.f32.mrb[0].mxu0
        %v773 = vadd.f32 0.0, %v772
        %v774 = vpop.f32.mrb[0].mxu0
        %v775 = vpop.f32.mrb[0].mxu0
        %v776 = vadd.f32 0.0, %v775
        %v777 = vpop.f32.mrb[0].mxu0
        %778 = vmatprep.mubr.bf16.mxu0 0
        %779 = vmatmul.mubr.bf16.gmra.mrb[0].mxu0 %v693
        %v780 = vpop.f32.mrb[0].mxu0
        %v781 = vadd.f32 0.0, %v780
        %v782 = vpop.f32.mrb[0].mxu0
        %v783 = vpop.f32.mrb[0].mxu0
        %v784 = vadd.f32 0.0, %v783
        %v785 = vpop.f32.mrb[0].mxu0
        %786 = vmatprep.mubr.bf16.mxu0 0
        %787 = vmatmul.mubr.bf16.gmra.mrb[0].mxu0 %v696
        %v788 = vpop.f32.mrb[0].mxu0
        %v789 = vadd.f32 0.0, %v788
        %v790 = vpop.f32.mrb[0].mxu0
        %v791 = vpop.f32.mrb[0].mxu0
        %v792 = vadd.f32 0.0, %v791
        %v793 = vpop.f32.mrb[0].mxu0
        %794 = vdwg.mxu0
        %v795 = vadd.f32 %v600, %v733
        %v796 = vadd.f32 %v603, %v736
        %v797 = vadd.f32 %v608, %v741
        %v798 = vadd.f32 %v611, %v744
        %v799 = vadd.f32 %v616, %v749
        %v800 = vadd.f32 %v619, %v752
        %v801 = vadd.f32 %v624, %v757
        %v802 = vadd.f32 %v627, %v760
        %v803 = vadd.f32 %v632, %v765
        %v804 = vadd.f32 %v635, %v768
        %v805 = vadd.f32 %v640, %v773
        %v806 = vadd.f32 %v643, %v776
        %v807 = vadd.f32 %v648, %v781
        %v808 = vadd.f32 %v651, %v784
        %v809 = vadd.f32 %v656, %v789
        %v810 = vadd.f32 %v659, %v792
        %v811 = vlaneseq
        %v812 = vand.u32 %v811, 127
        %vm813 = vcmp.eq.s32.totalorder %v812, 0
        %s814 = sld [smem:[#allocation4]]
        %s815 = sld [smem:[#allocation4 + $0x1]]
        %v816 = vstv %s814
        %v817 = vstv %s815
        %v818 = vsel %vm813, %v816, %v817
        %v819 = vlaneseq
        %v820 = vshrl.u32 %v819, 7
        %v821 = vadd.s32 %v820, 8
        %v822 = vadd.s32 %v820, 16
        %v823 = vadd.s32 %v820, 24
        %v824 = vadd.s32 %v820, 32
        %v825 = vadd.s32 %v820, 40
        %v826 = vadd.s32 %v820, 48
        %v827 = vadd.s32 %v820, 56
        %v828 = vadd.s32 %v820, 64
        %v829 = vadd.s32 %v820, 72
        %v830 = vadd.s32 %v820, 80
        %v831 = vadd.s32 %v820, 88
        %v832 = vadd.s32 %v820, 96
        %v833 = vadd.s32 %v820, 104
        %v834 = vadd.s32 %v820, 112
        %v835 = vadd.s32 %v820, 120
        %s836 = sld [smem:[#allocation3 + %s24]]
        %v837 = vstv %s836
        %vm838 = vcmp.lt.s32.totalorder %v820, %v837
        %vm839 = vcmp.lt.s32.totalorder %v821, %v837
        %vm840 = vcmp.lt.s32.totalorder %v822, %v837
        %vm841 = vcmp.lt.s32.totalorder %v823, %v837
        %vm842 = vcmp.lt.s32.totalorder %v824, %v837
        %vm843 = vcmp.lt.s32.totalorder %v825, %v837
        %vm844 = vcmp.lt.s32.totalorder %v826, %v837
        %vm845 = vcmp.lt.s32.totalorder %v827, %v837
        %vm846 = vcmp.lt.s32.totalorder %v828, %v837
        %vm847 = vcmp.lt.s32.totalorder %v829, %v837
        %vm848 = vcmp.lt.s32.totalorder %v830, %v837
        %vm849 = vcmp.lt.s32.totalorder %v831, %v837
        %vm850 = vcmp.lt.s32.totalorder %v832, %v837
        %vm851 = vcmp.lt.s32.totalorder %v833, %v837
        %vm852 = vcmp.lt.s32.totalorder %v834, %v837
        %vm853 = vcmp.lt.s32.totalorder %v835, %v837
        %v854 = vadd.f32 %v795, %v818
        %v855 = vadd.f32 %v796, %v818
        %v856 = vadd.f32 %v797, %v818
        %v857 = vadd.f32 %v798, %v818
        %v858 = vadd.f32 %v799, %v818
        %v859 = vadd.f32 %v800, %v818
        %v860 = vadd.f32 %v801, %v818
        %v861 = vadd.f32 %v802, %v818
        %v862 = vadd.f32 %v803, %v818
        %v863 = vadd.f32 %v804, %v818
        %v864 = vadd.f32 %v805, %v818
        %v865 = vadd.f32 %v806, %v818
        %v866 = vadd.f32 %v807, %v818
        %v867 = vadd.f32 %v808, %v818
        %v868 = vadd.f32 %v809, %v818
        %v869 = vadd.f32 %v810, %v818
        %v870 = vsel %vm838, %v854, -1e+30
        %v871 = vsel %vm839, %v855, -1e+30
        %v872 = vsel %vm840, %v856, -1e+30
        %v873 = vsel %vm841, %v857, -1e+30
        %v874 = vsel %vm842, %v858, -1e+30
        %v875 = vsel %vm843, %v859, -1e+30
        %v876 = vsel %vm844, %v860, -1e+30
        %v877 = vsel %vm845, %v861, -1e+30
        %v878 = vsel %vm846, %v862, -1e+30
        %v879 = vsel %vm847, %v863, -1e+30
        %v880 = vsel %vm848, %v864, -1e+30
        %v881 = vsel %vm849, %v865, -1e+30
        %v882 = vsel %vm850, %v866, -1e+30
        %v883 = vsel %vm851, %v867, -1e+30
        %v884 = vsel %vm852, %v868, -1e+30
        %v885 = vsel %vm853, %v869, -1e+30
        %vm886 = vcmask 15360
        %v887 = vsel %vm886, %v870, -inf
        %v888 = vsel %vm886, %v871, -inf
        %v889 = vsel %vm886, %v872, -inf
        %v890 = vsel %vm886, %v873, -inf
        %v891 = vsel %vm886, %v874, -inf
        %v892 = vmax.f32 %v887, %v891
        %v893 = vsel %vm886, %v875, -inf
        %v894 = vmax.f32 %v888, %v893
        %v895 = vsel %vm886, %v876, -inf
        %v896 = vmax.f32 %v889, %v895
        %v897 = vsel %vm886, %v877, -inf
        %v898 = vmax.f32 %v890, %v897
        %v899 = vsel %vm886, %v878, -inf
        %v900 = vmax.f32 %v892, %v899
        %v901 = vsel %vm886, %v879, -inf
        %v902 = vmax.f32 %v894, %v901
        %v903 = vsel %vm886, %v880, -inf
        %v904 = vmax.f32 %v896, %v903
        %v905 = vsel %vm886, %v881, -inf
        %v906 = vmax.f32 %v898, %v905
        %v907 = vsel %vm886, %v882, -inf
        %v908 = vmax.f32 %v900, %v907
        %v909 = vsel %vm886, %v883, -inf
        %v910 = vmax.f32 %v902, %v909
        %v911 = vsel %vm886, %v884, -inf
        %v912 = vmax.f32 %v904, %v911
        %v913 = vsel %vm886, %v885, -inf
        %v914 = vmax.f32 %v906, %v913
        %v915 = vmax.f32 %v908, %v910
        %v916 = vmax.f32 %v912, %v914
        %v917 = vmax.f32 %v915, %v916
        %v918 = vrot.slane %v917, 4
        %v919 = vmax.f32 %v917, %v918
        %v920 = vrot.slane %v919, 2
        %v921 = vmax.f32 %v919, %v920
        %v922 = vrot.slane %v921, 1
        %v923 = vmax.f32 %v921, %v922
        %v924 = vsub.f32 %v870, %v923
        %v925 = vsub.f32 %v871, %v923
        %v926 = vsub.f32 %v872, %v923
        %v927 = vsub.f32 %v873, %v923
        %v928 = vsub.f32 %v874, %v923
        %v929 = vsub.f32 %v875, %v923
        %v930 = vsub.f32 %v876, %v923
        %v931 = vsub.f32 %v877, %v923
        %v932 = vsub.f32 %v878, %v923
        %v933 = vsub.f32 %v879, %v923
        %v934 = vsub.f32 %v880, %v923
        %v935 = vsub.f32 %v881, %v923
        %v936 = vsub.f32 %v882, %v923
        %v937 = vsub.f32 %v883, %v923
        %v938 = vsub.f32 %v884, %v923
        %v939 = vsub.f32 %v885, %v923
        %v940 = vmul.f32 %v924, 1.442695
        %v941 = vpow.pop %v940
        %v942 = vmul.f32 %v925, 1.442695
        %v943 = vpow.pop %v942
        %v944 = vmul.f32 %v926, 1.442695
        %v945 = vpow.pop %v944
        %v946 = vmul.f32 %v927, 1.442695
        %v947 = vpow.pop %v946
        %v948 = vmul.f32 %v928, 1.442695
        %v949 = vpow.pop %v948
        %v950 = vmul.f32 %v929, 1.442695
        %v951 = vpow.pop %v950
        %v952 = vmul.f32 %v930, 1.442695
        %v953 = vpow.pop %v952
        %v954 = vmul.f32 %v931, 1.442695
        %v955 = vpow.pop %v954
        %v956 = vmul.f32 %v932, 1.442695
        %v957 = vpow.pop %v956
        %v958 = vmul.f32 %v933, 1.442695
        %v959 = vpow.pop %v958
        %v960 = vmul.f32 %v934, 1.442695
        %v961 = vpow.pop %v960
        %v962 = vmul.f32 %v935, 1.442695
        %v963 = vpow.pop %v962
        %v964 = vmul.f32 %v936, 1.442695
        %v965 = vpow.pop %v964
        %v966 = vmul.f32 %v937, 1.442695
        %v967 = vpow.pop %v966
        %v968 = vmul.f32 %v938, 1.442695
        %v969 = vpow.pop %v968
        %v970 = vmul.f32 %v939, 1.442695
        %v971 = vpow.pop %v970
        %v972 = vsel %vm886, %v941, 0.0
        %v973 = vsel %vm886, %v943, 0.0
        %v974 = vadd.f32 %v972, %v973
        %v975 = vsel %vm886, %v945, 0.0
        %v976 = vadd.f32 %v974, %v975
        %v977 = vsel %vm886, %v947, 0.0
        %v978 = vadd.f32 %v976, %v977
        %v979 = vsel %vm886, %v949, 0.0
        %v980 = vadd.f32 %v978, %v979
        %v981 = vsel %vm886, %v951, 0.0
        %v982 = vadd.f32 %v980, %v981
        %v983 = vsel %vm886, %v953, 0.0
        %v984 = vadd.f32 %v982, %v983
        %v985 = vsel %vm886, %v955, 0.0
        %v986 = vadd.f32 %v984, %v985
        %v987 = vsel %vm886, %v957, 0.0
        %v988 = vadd.f32 %v986, %v987
        %v989 = vsel %vm886, %v959, 0.0
        %v990 = vadd.f32 %v988, %v989
        %v991 = vsel %vm886, %v961, 0.0
        %v992 = vadd.f32 %v990, %v991
        %v993 = vsel %vm886, %v963, 0.0
        %v994 = vadd.f32 %v992, %v993
        %v995 = vsel %vm886, %v965, 0.0
        %v996 = vadd.f32 %v994, %v995
        %v997 = vsel %vm886, %v967, 0.0
        %v998 = vadd.f32 %v996, %v997
        %v999 = vsel %vm886, %v969, 0.0
        %v1000 = vadd.f32 %v998, %v999
        %v1001 = vsel %vm886, %v971, 0.0
        %v1002 = vadd.f32 %v1000, %v1001
        %v1003 = vrot.slane %v1002, 4
        %v1004 = vadd.f32 %v1002, %v1003
        %v1005 = vrot.slane %v1004, 2
        %v1006 = vadd.f32 %v1004, %v1005
        %v1007 = vrot.slane %v1006, 1
        %v1008 = vadd.f32 %v1006, %v1007
        %v1009 = vlog2.pop %v1008
        %v1010 = vmul.f32 %v1009, 0.6931472
        %v1011 = vsub.f32 %v924, %v1010
        %v1012 = vsub.f32 %v925, %v1010
        %v1013 = vsub.f32 %v926, %v1010
        %v1014 = vsub.f32 %v927, %v1010
        %v1015 = vsub.f32 %v928, %v1010
        %v1016 = vsub.f32 %v929, %v1010
        %v1017 = vsub.f32 %v930, %v1010
        %v1018 = vsub.f32 %v931, %v1010
        %v1019 = vsub.f32 %v932, %v1010
        %v1020 = vsub.f32 %v933, %v1010
        %v1021 = vsub.f32 %v934, %v1010
        %v1022 = vsub.f32 %v935, %v1010
        %v1023 = vsub.f32 %v936, %v1010
        %v1024 = vsub.f32 %v937, %v1010
        %v1025 = vsub.f32 %v938, %v1010
        %v1026 = vsub.f32 %v939, %v1010
        %1027 = vst.msk [vmem:[%s285] sm:$0xff] %vm886, %v1011
        %1028 = vst.msk [vmem:[%s285 + $0x8] sm:$0xff] %vm886, %v1012
        %1029 = vst.msk [vmem:[%s285 + $0x10] sm:$0xff] %vm886, %v1013
        %1030 = vst.msk [vmem:[%s285 + $0x18] sm:$0xff] %vm886, %v1014
        %1031 = vst.msk [vmem:[%s285 + $0x20] sm:$0xff] %vm886, %v1015
        %1032 = vst.msk [vmem:[%s285 + $0x28] sm:$0xff] %vm886, %v1016
        %1033 = vst.msk [vmem:[%s285 + $0x30] sm:$0xff] %vm886, %v1017
        %1034 = vst.msk [vmem:[%s285 + $0x38] sm:$0xff] %vm886, %v1018
        %1035 = vst.msk [vmem:[%s285 + $0x40] sm:$0xff] %vm886, %v1019
        %1036 = vst.msk [vmem:[%s285 + $0x48] sm:$0xff] %vm886, %v1020
        %1037 = vst.msk [vmem:[%s285 + $0x50] sm:$0xff] %vm886, %v1021
        %1038 = vst.msk [vmem:[%s285 + $0x58] sm:$0xff] %vm886, %v1022
        %1039 = vst.msk [vmem:[%s285 + $0x60] sm:$0xff] %vm886, %v1023
        %1040 = vst.msk [vmem:[%s285 + $0x68] sm:$0xff] %vm886, %v1024
        %1041 = vst.msk [vmem:[%s285 + $0x70] sm:$0xff] %vm886, %v1025
        %1042 = vst.msk [vmem:[%s285 + $0x78] sm:$0xff] %vm886, %v1026
        %p1043 = scmp.lt.s32.totalorder %s24, 1
        %s1044 = scalar_select %p1043, %s24, 1
        %s1045 = smul.addr %s1044, 16
        %s1046 = smul.addr %s1045, 8
        %s1047 = scalar_lea.vmem %s6, %s1046
        // Predicated region
        $region45: #{bidaf_output_forward.1} parent=39 // pred_check
          %p1048 = pneg %p162
        $region46: #{bidaf_output_forward.1} parent=39 // pred_check_branch
          %1050 = sbr.rel (%p1048) target = $region48
        $region47: #{bidaf_output_forward.1} parent=39 // pred_region
          _
        $region48: #{bidaf_output_forward.1} parent=39 // pred_fallthru
          _
      $region40: #{bidaf_output_forward.1} parent=5 // pred_fallthru
        _
      %p1051 = scmp.le.s32.totalorder 2, %s19
      // Predicated region
      $region49: #{bidaf_output_forward.1} parent=5 // pred_check
        %p1052 = pneg %p1051
      $region50: #{bidaf_output_forward.1} parent=5 // pred_check_branch
        %1054 = sbr.rel (%p1052) target = $region52
      $region51: #{bidaf_output_forward.1} parent=5 // pred_region
        %s1055 = ssub.s32 %s19, 2
        // Predicated region
        $region53: #{bidaf_output_forward.1} parent=51 // pred_check
          %p1056 = pneg %p168
        $region54: #{bidaf_output_forward.1} parent=51 // pred_check_branch
          %1058 = sbr.rel (%p1056) target = $region56
        $region55: #{bidaf_output_forward.1} parent=51 // pred_region
          %p1059 = scmp.lt.s32.totalorder %s25, 1
          %s1060 = scalar_select %p1059, %s25, 1
          %s1061 = smul.addr %s1060, 16
          %s1062 = smul.addr %s1061, 8
          %s1063 = scalar_lea.vmem %s6, %s1062
        $region56: #{bidaf_output_forward.1} parent=51 // pred_fallthru
          _
      $region52: #{bidaf_output_forward.1} parent=5 // pred_fallthru
        _
    $region6: #{bidaf_output_forward.1} parent=1 // loop_footer
      %s23 = sadd.s32 1, %s19
    $region7: #{bidaf_output_forward.1} parent=1 // loop_footer_branch
      %18 = sbr.rel target = $region3
    $region8: #{bidaf_output_forward.1} parent=1 // loop_exit
      _
    %1064 = vsyncpa [#allocation5], 1
    %s1065 = scalar_lea.sflag [#allocation5], 1
    %1066 = vsyncpa %s1065, 1

</llo_original>
